<compile_context>
chip_gen: v5e
topology: v5e:2x2
jax: 0.10.0
libtpu: 0.0.40
codegen_flags: <defaults>
</compile_context>

<pallas_src>
import jax
import jax.numpy as jnp
from jax.experimental import pallas as pl
from jax.experimental.pallas import tpu as pltpu


# -----------------------------------------------------------------------------
# Fused single-pass kernel: one (TB, C, F) tile per grid step.
# -----------------------------------------------------------------------------
def _se_fused_kernel(x_ref, w1_ref, w2_ref, o_ref):
    # x_ref / o_ref: (TB, C, F) in native dtype (NCL); w1_ref: (C,H); w2_ref: (H,C).
    # Squeeze: mean over the lane (F) axis, f32 accumulation for the (TB, C)
    # result only -- no full f32 copy of the tile.
    y = jnp.mean(x_ref[...], axis=-1, dtype=jnp.float32)                 # (TB, C)

    # Excitation: Linear -> ReLU -> Linear -> Sigmoid (tiny MXU work).
    h = jnp.maximum(jnp.dot(y, w1_ref[...], preferred_element_type=jnp.float32), 0.0)
    s = jax.nn.sigmoid(jnp.dot(h, w2_ref[...], preferred_element_type=jnp.float32))

    # Scale: per-channel gate splat over the lane (F) axis; re-read x_ref (no
    # reuse of a bound whole-tile value) and do a single fused multiply-store.
    o_ref[...] = (x_ref[...] * s.astype(o_ref.dtype)[:, :, None]).astype(o_ref.dtype)


# -----------------------------------------------------------------------------
# Two-pass path for large (C, F): pass 1 = F-tiled squeeze + excitation.
# -----------------------------------------------------------------------------
def _make_squeeze_kernel(f_total: int, tf: int):
    inv_f = 1.0 / float(f_total)
    ragged = (f_total % tf) != 0

    def kernel(x_ref, w1_ref, w2_ref, gate_ref, acc_ref):
        j = pl.program_id(1)

        @pl.when(j == 0)
        def _():
            acc_ref[...] = jnp.zeros_like(acc_ref)

        if ragged:
            # Mask the ragged F tail (padded lanes hold undefined data).
            x = x_ref[...]
            lane = jax.lax.broadcasted_iota(jnp.int32, x.shape, 2)
            valid = (j * tf + lane) < f_total
            x = jnp.where(valid, x, jnp.zeros_like(x))
            acc_ref[...] += jnp.sum(x, axis=-1, dtype=jnp.float32)
        else:
            acc_ref[...] += jnp.sum(x_ref[...], axis=-1, dtype=jnp.float32)

        @pl.when(j == pl.num_programs(1) - 1)
        def _():
            y = acc_ref[...] * inv_f                                       # (TB, C)
            h = jnp.maximum(
                jnp.dot(y, w1_ref[...], preferred_element_type=jnp.float32), 0.0)
            s = jax.nn.sigmoid(
                jnp.dot(h, w2_ref[...], preferred_element_type=jnp.float32))
            gate_ref[...] = s[:, :, None]                                  # (TB, C, 1)

    return kernel


# Two-pass path: pass 2 = F-tiled scale.
def _se_scale_kernel(gate_ref, x_ref, o_ref):
    # gate_ref: (TB, C, 1) f32; x_ref / o_ref: (TB, C, TF) native dtype.
    o_ref[...] = (x_ref[...] * gate_ref[...].astype(o_ref.dtype)).astype(o_ref.dtype)


# -----------------------------------------------------------------------------
# Wrapper
# -----------------------------------------------------------------------------
def se_block(x, w1t, w2t, *, target_tile_bytes=6 * 1024 * 1024):
    """SE block forward on NCL input (no HBM-level transposes).

    x:   (B, C, F)   feature map (PyTorch NCL layout)
    w1t: (C, C//r)   transpose of nn.Linear(c, c//r, bias=False).weight
    w2t: (C//r, C)   transpose of nn.Linear(c//r, c, bias=False).weight
    returns (B, C, F)
    """
    b, c, f = x.shape
    hdim = w1t.shape[1]
    itemsize = x.dtype.itemsize
    w_bytes = int(w1t.size) * w1t.dtype.itemsize + int(w2t.size) * w2t.dtype.itemsize

    # v7x has 64 MiB physical VMEM per TC: keep 4x tile (+ weights) <= ~48 MiB.
    tile_budget = min(int(target_tile_bytes), 10 * 1024 * 1024)
    min_steps = min(b, 8)  # >= 8 grid steps where possible: pipelining + both v7x TCs

    def vmem_limit(per_step_io_bytes):
        # Double-buffered in/out blocks + weight buffers + margin, clamped to a
        # range that is >= default scoped VMEM and <= v7x-safe 48 MiB.
        need = 2 * per_step_io_bytes + 2 * w_bytes + (2 << 20)
        return int(min(48 << 20, max(32 << 20, need)))

    row_bytes = c * f * itemsize  # one (C, F) feature map

    if row_bytes <= tile_budget:
        # ---- fused single-pass path: tile over the batch axis only ----------
        tb = max(1, min(b, tile_budget // row_bytes, pl.cdiv(b, min_steps)))
        grid = (pl.cdiv(b, tb),)
        block_bytes = tb * row_bytes
        return pl.pallas_call(
            _se_fused_kernel,
            out_shape=jax.ShapeDtypeStruct((b, c, f), x.dtype),
            grid_spec=pltpu.PrefetchScalarGridSpec(
                num_scalar_prefetch=0,
                grid=grid,
                in_specs=[
                    pl.BlockSpec((tb, c, f), lambda i: (i, 0, 0)),
                    # Weights: full-array blocks, constant index map -> fetched
                    # once and resident across all grid steps.
                    pl.BlockSpec((c, hdim), lambda i: (0, 0)),
                    pl.BlockSpec((hdim, c), lambda i: (0, 0)),
                ],
                out_specs=pl.BlockSpec((tb, c, f), lambda i: (i, 0, 0)),
            ),
            compiler_params=pltpu.CompilerParams(
                dimension_semantics=("parallel",),
                vmem_limit_bytes=vmem_limit(2 * block_bytes),
            ),
        )(x, w1t, w2t)

    # ---- two-pass path: one (C, F) row does not fit the tile budget ---------
    # F tile on the lane axis: a multiple of 128 (or all of F if F <= 128).
    if f <= 128:
        tf = f
    else:
        tf = max(128, (tile_budget // (c * itemsize)) // 128 * 128)
        tf = min(tf, f)
    tb = max(1, min(b, tile_budget // (c * tf * itemsize), pl.cdiv(b, min_steps)))
    grid = (pl.cdiv(b, tb), pl.cdiv(f, tf))
    x_block_bytes = tb * c * tf * itemsize
    gate_block_bytes = tb * c * 4

    # Pass 1: F-tiled squeeze (reduction axis "arbitrary", VMEM accumulator)
    # + excitation on the last F step -> per-(B, C) gates, kept f32, shaped
    # (B, C, 1) so the block's trailing dims always satisfy the (8,128) rule.
    gates = pl.pallas_call(
        _make_squeeze_kernel(f, tf),
        out_shape=jax.ShapeDtypeStruct((b, c, 1), jnp.float32),
        grid_spec=pltpu.PrefetchScalarGridSpec(
            num_scalar_prefetch=0,
            grid=grid,
            in_specs=[
                pl.BlockSpec((tb, c, tf), lambda i, j: (i, 0, j)),
                pl.BlockSpec((c, hdim), lambda i, j: (0, 0)),
                pl.BlockSpec((hdim, c), lambda i, j: (0, 0)),
            ],
            out_specs=pl.BlockSpec((tb, c, 1), lambda i, j: (i, 0, 0)),
            scratch_shapes=[pltpu.VMEM((tb, c), jnp.float32)],
        ),
        compiler_params=pltpu.CompilerParams(
            dimension_semantics=("parallel", "arbitrary"),
            vmem_limit_bytes=vmem_limit(x_block_bytes + gate_block_bytes),
        ),
    )(x, w1t, w2t)

    # Pass 2: scale, tiled freely over (B, F).
    return pl.pallas_call(
        _se_scale_kernel,
        out_shape=jax.ShapeDtypeStruct((b, c, f), x.dtype),
        grid_spec=pltpu.PrefetchScalarGridSpec(
            num_scalar_prefetch=0,
            grid=grid,
            in_specs=[
                pl.BlockSpec((tb, c, 1), lambda i, j: (i, 0, 0)),
                pl.BlockSpec((tb, c, tf), lambda i, j: (i, 0, j)),
            ],
            out_specs=pl.BlockSpec((tb, c, tf), lambda i, j: (i, 0, j)),
        ),
        compiler_params=pltpu.CompilerParams(
            dimension_semantics=("parallel", "parallel"),
            vmem_limit_bytes=vmem_limit(2 * x_block_bytes + gate_block_bytes),
        ),
    )(gates, x)


def se_block_reference(x, w1t, w2t):
    """Pure-JAX reference matching the PyTorch forward."""
    y = jnp.mean(x, axis=-1)
    s = jax.nn.sigmoid(jnp.maximum(y @ w1t, 0.0) @ w2t)
    return x * s[:, :, None]


def _make_inputs(key, b, c, f, r):
    h = c // r
    kx, k1, k2 = jax.random.split(key, 3)
    x = jax.random.normal(kx, (b, c, f), dtype=jnp.float32)
    # nn.Linear(c, c//r, bias=False).weight has shape (c//r, c); pass transposes.
    w1 = jax.random.normal(k1, (h, c), dtype=jnp.float32) / jnp.sqrt(float(c))
    w2 = jax.random.normal(k2, (c, h), dtype=jnp.float32) / jnp.sqrt(float(h))
    return x, w1.T, w2.T


if __name__ == "__main__":
    key = jax.random.PRNGKey(0)
    k0, k1, k2 = jax.random.split(key, 3)

    # 1) Module-default config (r=16): fused single-pass path, grid=(4,).
    x, w1t, w2t = _make_inputs(k0, b=4, c=32, f=16, r=16)
    out = jax.block_until_ready(se_block(x, w1t, w2t))
    assert out.shape == x.shape
    assert jnp.allclose(out, se_block_reference(x, w1t, w2t), atol=1e-5, rtol=1e-5)

    # 2) Ragged last batch tile in the fused path (b=20 -> tb=3, last tile = 2 rows).
    x, w1t, w2t = _make_inputs(k1, b=20, c=16, f=128, r=8)
    out = jax.block_until_ready(se_block(x, w1t, w2t))
    assert jnp.allclose(out, se_block_reference(x, w1t, w2t), atol=1e-5, rtol=1e-5)

    # 3) Large feature map forced through the two-pass (F-tiled) path with a
    #    ragged F tail (tf=256 over F=384, masked partial-sum on the last tile).
    x, w1t, w2t = _make_inputs(k2, b=2, c=32, f=384, r=16)
    out = jax.block_until_ready(se_block(x, w1t, w2t, target_tile_bytes=32 * 1024))
    assert jnp.allclose(out, se_block_reference(x, w1t, w2t), atol=1e-5, rtol=1e-5)

    print("KERNEL_OK")
</pallas_src>

<mosaic_0001>
module attributes {stable_mosaic.version = 11 : i64} {
  func.func @_se_fused_kernel(%arg0: i32, %arg1: memref<1x32x16xf32, #tpu.memory_space<vmem>>, %arg2: memref<32x2xf32, #tpu.memory_space<vmem>>, %arg3: memref<2x32xf32, #tpu.memory_space<vmem>>, %arg4: memref<1x32x16xf32, #tpu.memory_space<vmem>>) attributes {dimension_semantics = [#tpu.dimension_semantics<parallel>], iteration_bounds = array<i64: 4>, scalar_prefetch = 0 : i64, scratch_operands = 0 : i64, tpu.core_type = #tpu.core_type<tc>, window_params = [{transform_indices = @transform_0, window_bounds = array<i64: 1, 32, 16>}, {pipeline_mode = #tpu.pipeline_mode<synchronous>, transform_indices = @transform_1, window_bounds = array<i64: 32, 2>}, {pipeline_mode = #tpu.pipeline_mode<synchronous>, transform_indices = @transform_2, window_bounds = array<i64: 2, 32>}, {transform_indices = @transform_3, window_bounds = array<i64: 1, 32, 16>}]} {
    %c0 = arith.constant 0 : index
    %c0_0 = arith.constant 0 : index
    %c0_1 = arith.constant 0 : index
    %0 = vector.load %arg1[%c0, %c0_0, %c0_1] : memref<1x32x16xf32, #tpu.memory_space<vmem>>, vector<1x32x16xf32>
    %cst = arith.constant dense<0.000000e+00> : vector<1x32xf32>
    %1 = vector.multi_reduction <add>, %0, %cst [2] : vector<1x32x16xf32> to vector<1x32xf32>
    %cst_2 = arith.constant 1.600000e+01 : f32
    %2 = vector.broadcast %cst_2 : f32 to vector<1x32xf32>
    %3 = arith.divf %1, %2 : vector<1x32xf32>
    %c0_3 = arith.constant 0 : index
    %c0_4 = arith.constant 0 : index
    %4 = vector.load %arg2[%c0_3, %c0_4] : memref<32x2xf32, #tpu.memory_space<vmem>>, vector<32x2xf32>
    %cst_5 = arith.constant dense<0.000000e+00> : vector<1x2xf32>
    %5 = tpu.matmul %3, %4, %cst_5 {dimension_numbers = #tpu.dot_dimension_numbers<[1], [0], [0], [1], [0, 0, 1, 1], [], []>} : vector<1x32xf32>, vector<32x2xf32>, vector<1x2xf32> -> vector<1x2xf32>
    %cst_6 = arith.constant 0.000000e+00 : f32
    %6 = vector.broadcast %cst_6 : f32 to vector<1x2xf32>
    %7 = arith.maximumf %5, %6 : vector<1x2xf32>
    %c0_7 = arith.constant 0 : index
    %c0_8 = arith.constant 0 : index
    %8 = vector.load %arg3[%c0_7, %c0_8] : memref<2x32xf32, #tpu.memory_space<vmem>>, vector<2x32xf32>
    %cst_9 = arith.constant dense<0.000000e+00> : vector<1x32xf32>
    %9 = tpu.matmul %7, %8, %cst_9 {dimension_numbers = #tpu.dot_dimension_numbers<[1], [0], [0], [1], [0, 0, 1, 1], [], []>} : vector<1x2xf32>, vector<2x32xf32>, vector<1x32xf32> -> vector<1x32xf32>
    %10 = arith.negf %9 : vector<1x32xf32>
    %11 = math.exp %10 : vector<1x32xf32>
    %cst_10 = arith.constant 1.000000e+00 : f32
    %12 = vector.broadcast %cst_10 : f32 to vector<1x32xf32>
    %13 = arith.addf %12, %11 : vector<1x32xf32>
    %14 = arith.divf %12, %13 : vector<1x32xf32>
    %c0_11 = arith.constant 0 : index
    %c0_12 = arith.constant 0 : index
    %c0_13 = arith.constant 0 : index
    %15 = vector.load %arg1[%c0_11, %c0_12, %c0_13] : memref<1x32x16xf32, #tpu.memory_space<vmem>>, vector<1x32x16xf32>
    %16 = vector.shape_cast %14 : vector<1x32xf32> to vector<1x32x1xf32>
    %17 = vector.broadcast %16 : vector<1x32x1xf32> to vector<1x32x16xf32>
    %18 = arith.mulf %15, %17 : vector<1x32x16xf32>
    %c0_14 = arith.constant 0 : index
    %c0_15 = arith.constant 0 : index
    %c0_16 = arith.constant 0 : index
    %19 = vector.load %arg4[%c0_14, %c0_15, %c0_16] : memref<1x32x16xf32, #tpu.memory_space<vmem>>, vector<1x32x16xf32>
    tpu.vector_store %arg4[%c0_14, %c0_15, %c0_16], %18 {strides = array<i32>} : memref<1x32x16xf32, #tpu.memory_space<vmem>>, vector<1x32x16xf32>,
    return
  }
  func.func @transform_0(%arg0: i32) -> (i32, i32, i32) {
    %c0_i32 = arith.constant 0 : i32
    %c0_i32_0 = arith.constant 0 : i32
    %c0_i32_1 = arith.constant 0 : i32
    return %arg0, %c0_i32, %c0_i32_0 : i32, i32, i32
  }
  func.func @transform_1(%arg0: i32) -> (i32, i32) {
    %c0_i32 = arith.constant 0 : i32
    %c0_i32_0 = arith.constant 0 : i32
    %c0_i32_1 = arith.constant 0 : i32
    return %c0_i32, %c0_i32_0 : i32, i32
  }
  func.func @transform_2(%arg0: i32) -> (i32, i32) {
    %c0_i32 = arith.constant 0 : i32
    %c0_i32_0 = arith.constant 0 : i32
    %c0_i32_1 = arith.constant 0 : i32
    return %c0_i32, %c0_i32_0 : i32, i32
  }
  func.func @transform_3(%arg0: i32) -> (i32, i32, i32) {
    %c0_i32 = arith.constant 0 : i32
    %c0_i32_0 = arith.constant 0 : i32
    %c0_i32_1 = arith.constant 0 : i32
    return %arg0, %c0_i32, %c0_i32_0 : i32, i32, i32
  }
}

</mosaic_0001>

<llo_original>
// kernel: tpu_custom_call.1
$region0: #{tpu_custom_call.1}
  #allocation0 [shape = 'u32[]', space=smem, size = 0x4, offset = 0x4, fixed_abs, tag = 'smem constant byte address 0x4 - core index']
  #allocation1 [shape = 'u32[72,128]{1,0:T(1,128)}', space=vmem, size = 0x9000, scoped, tag = 'internal scratch']
  %s0 = inlined_call_operand.vmem [shape: f32[4,32,16], index: 0, kind: input, shape index: {}]
  %s1 = inlined_call_operand.vmem [shape: f32[32,2], index: 1, kind: input, shape index: {}]
  %s2 = inlined_call_operand.vmem [shape: f32[2,32], index: 2, kind: input, shape index: {}]
  %s3 = inlined_call_operand.vmem [shape: f32[4,32,16], index: 3, kind: output, shape index: {}]
  %s4 = sld [smem:[#allocation0]]
  $region45: #{tpu_custom_call.1} parent=0
    _
  %s6 = ssub.s32 1, %s4
  %s7 = scalar_select 0, %s6, %s4
  loop: start=0, step=1, limit=6
  $region2: #{tpu_custom_call.1} parent=0 // loop_pre_header
    _
  $region3: #{tpu_custom_call.1} parent=0 // loop_header
    %s9 = sphi 0, %s13
    %p10 = scmp.ge.s32.totalorder %s9, 6
    %s19 = sphi 0, %s21
    %s22 = sphi 0, %s19
    %s23 = sphi 0, %s22
    %s39 = sphi 0, %s23
    %s43 = sphi 0, %s43
    %s45 = sphi 0, %s43
    %s46 = sphi 0, %s45
    %s60 = sphi 0, %s46
    %s64 = sphi 0, %s64
    %s66 = sphi 0, %s64
    %s67 = sphi 0, %s66
    %s81 = sphi 0, %s67
    %s87 = sphi 0, %s89
    %s90 = sphi 0, %s87
    %s91 = sphi 0, %s90
    %s107 = sphi 0, %s91
  $region4: #{tpu_custom_call.1} parent=0 // loop_header_branch
    %12 = sbr.rel (%p10) target = $region8
  $region5: #{tpu_custom_call.1} parent=0 // loop_body
    %s14 = ssub.s32 %s9, 1
    %s15 = ssub.s32 %s9, 2
    %s16 = sadd.s32 %s9, 1
    %s17 = ssub.s32 %s9, %s16
    %p18 = scmp.eq.s32.totalorder %s17, 0
    %s20 = sadd.s32 %s19, 1
    %s21 = scalar_select %p18, %s19, %s20
    %p24 = pneg %p18
    %p25 = scmp.eq.s32.totalorder %s9, 3
    %p26 = por %p24, %p25
    %p27 = scmp.ne.s32.totalorder %s19, %s22
    %p28 = scmp.eq.s32.totalorder %s9, 0
    %p29 = por %p27, %p28
    %p30 = scmp.ne.s32.totalorder %s19, %s22
    %p31 = scmp.eq.s32.totalorder %s14, 3
    %p32 = por %p30, %p31
    %p33 = scmp.ne.s32.totalorder %s22, %s23
    %p34 = scmp.eq.s32.totalorder %s14, 0
    %p35 = por %p33, %p34
    %p36 = scmp.ne.s32.totalorder %s22, %s23
    %p37 = scmp.eq.s32.totalorder %s15, 3
    %p38 = por %p36, %p37
    %p40 = scmp.ne.s32.totalorder %s23, %s39
    %p41 = scmp.eq.s32.totalorder %s15, 0
    %p42 = por %p40, %p41
    %s44 = sadd.s32 %s43, 1
    %p47 = scmp.eq.s32.totalorder %s9, 3
    %p48 = scmp.ne.s32.totalorder %s43, %s45
    %p49 = scmp.eq.s32.totalorder %s9, 0
    %p50 = por %p48, %p49
    %p51 = scmp.ne.s32.totalorder %s43, %s45
    %p52 = scmp.eq.s32.totalorder %s14, 3
    %p53 = por %p51, %p52
    %p54 = scmp.ne.s32.totalorder %s45, %s46
    %p55 = scmp.eq.s32.totalorder %s14, 0
    %p56 = por %p54, %p55
    %p57 = scmp.ne.s32.totalorder %s45, %s46
    %p58 = scmp.eq.s32.totalorder %s15, 3
    %p59 = por %p57, %p58
    %p61 = scmp.ne.s32.totalorder %s46, %s60
    %p62 = scmp.eq.s32.totalorder %s15, 0
    %p63 = por %p61, %p62
    %s65 = sadd.s32 %s64, 1
    %p68 = scmp.eq.s32.totalorder %s9, 3
    %p69 = scmp.ne.s32.totalorder %s64, %s66
    %p70 = scmp.eq.s32.totalorder %s9, 0
    %p71 = por %p69, %p70
    %p72 = scmp.ne.s32.totalorder %s64, %s66
    %p73 = scmp.eq.s32.totalorder %s14, 3
    %p74 = por %p72, %p73
    %p75 = scmp.ne.s32.totalorder %s66, %s67
    %p76 = scmp.eq.s32.totalorder %s14, 0
    %p77 = por %p75, %p76
    %p78 = scmp.ne.s32.totalorder %s66, %s67
    %p79 = scmp.eq.s32.totalorder %s15, 3
    %p80 = por %p78, %p79
    %p82 = scmp.ne.s32.totalorder %s67, %s81
    %p83 = scmp.eq.s32.totalorder %s15, 0
    %p84 = por %p82, %p83
    %s85 = ssub.s32 %s9, %s16
    %p86 = scmp.eq.s32.totalorder %s85, 0
    %s88 = sadd.s32 %s87, 1
    %s89 = scalar_select %p86, %s87, %s88
    %p92 = pneg %p86
    %p93 = scmp.eq.s32.totalorder %s9, 3
    %p94 = por %p92, %p93
    %p95 = scmp.ne.s32.totalorder %s87, %s90
    %p96 = scmp.eq.s32.totalorder %s9, 0
    %p97 = por %p95, %p96
    %p98 = scmp.ne.s32.totalorder %s87, %s90
    %p99 = scmp.eq.s32.totalorder %s14, 3
    %p100 = por %p98, %p99
    %p101 = scmp.ne.s32.totalorder %s90, %s91
    %p102 = scmp.eq.s32.totalorder %s14, 0
    %p103 = por %p101, %p102
    %p104 = scmp.ne.s32.totalorder %s90, %s91
    %p105 = scmp.eq.s32.totalorder %s15, 3
    %p106 = por %p104, %p105
    %p108 = scmp.ne.s32.totalorder %s91, %s107
    %p109 = scmp.eq.s32.totalorder %s15, 0
    %p110 = por %p108, %p109
    %p111 = scmp.le.s32.totalorder 1, %s9
    %p112 = scmp.lt.s32.totalorder %s9, 5
    %p113 = pnand %p111, %p112
    %p114 = pneg %p113
    // Predicated region
    $region9: #{tpu_custom_call.1} parent=5 // pred_check
      _
    $region10: #{tpu_custom_call.1} parent=5 // pred_check_branch
      %116 = sbr.rel (%p113) target = $region12
    $region11: #{tpu_custom_call.1} parent=5 // pred_region
      %s117 = ssub.s32 %s9, 1
      // Predicated region
      $region13: #{tpu_custom_call.1} parent=11 // pred_check
        %p118 = pneg %p56
      $region14: #{tpu_custom_call.1} parent=11 // pred_check_branch
        %120 = sbr.rel (%p118) target = $region16
      $region15: #{tpu_custom_call.1} parent=11 // pred_region
        _
      $region16: #{tpu_custom_call.1} parent=11 // pred_fallthru
        _
      // Predicated region
      $region17: #{tpu_custom_call.1} parent=11 // pred_check
        %p121 = pneg %p77
      $region18: #{tpu_custom_call.1} parent=11 // pred_check_branch
        %123 = sbr.rel (%p121) target = $region20
      $region19: #{tpu_custom_call.1} parent=11 // pred_region
        _
      $region20: #{tpu_custom_call.1} parent=11 // pred_fallthru
        _
    $region12: #{tpu_custom_call.1} parent=5 // pred_fallthru
      _
    %p124 = scmp.lt.s32.totalorder %s9, 4
    // Predicated region
    $region21: #{tpu_custom_call.1} parent=5 // pred_check
      %p125 = pneg %p124
    $region22: #{tpu_custom_call.1} parent=5 // pred_check_branch
      %127 = sbr.rel (%p125) target = $region24
    $region23: #{tpu_custom_call.1} parent=5 // pred_region
      // Predicated region
      $region25: #{tpu_custom_call.1} parent=23 // pred_check
        %p128 = pneg %p29
      $region26: #{tpu_custom_call.1} parent=23 // pred_check_branch
        %130 = sbr.rel (%p128) target = $region28
      $region27: #{tpu_custom_call.1} parent=23 // pred_region
        %p131 = scmp.lt.s32.totalorder %s9, 3
        %s132 = scalar_select %p131, %s9, 3
        %s133 = smul.addr %s132, 4
        %s134 = smul.addr %s133, 8
        %s135 = scalar_lea.vmem %s0, %s134
      $region28: #{tpu_custom_call.1} parent=23 // pred_fallthru
        _
    $region24: #{tpu_custom_call.1} parent=5 // pred_fallthru
      _
    %p136 = scmp.le.s32.totalorder 1, %s9
    %p137 = scmp.lt.s32.totalorder %s9, 5
    %p138 = pnand %p136, %p137
    %p139 = pneg %p138
    // Predicated region
    $region29: #{tpu_custom_call.1} parent=5 // pred_check
      _
    $region30: #{tpu_custom_call.1} parent=5 // pred_check_branch
      %141 = sbr.rel (%p138) target = $region32
    $region31: #{tpu_custom_call.1} parent=5 // pred_region
      %s142 = ssub.s32 %s9, 1
      %p143 = scmp.lt.s32.totalorder %s14, 3
      %s144 = scalar_select %p143, %s14, 3
      %s145 = smul.addr %s144, 4
      %s146 = smul.addr %s145, 8
      %s147 = scalar_lea.vmem %s0, %s146
      %p148 = pneg %p35
      %p149 = pneg %p32
      %p150 = pneg %p56
      %p151 = pneg %p53
      %p152 = pneg %p77
      %p153 = pneg %p74
      %p154 = pneg %p103
      %p155 = pneg %p100
      %p156 = scmp.lt.s32.totalorder %s14, 3
      %s157 = scalar_select %p156, %s14, 3
      %s158 = smul.addr %s157, 4
      %s159 = smul.addr %s158, 8
      %s160 = scalar_lea.vmem %s3, %s159
      %p161 = scmp.lt.s32.totalorder %s14, 3
      %s162 = scalar_select %p161, %s14, 3
      %s163 = smul.addr %s162, 4
      %s164 = smul.addr %s163, 8
      %s165 = scalar_lea.vmem %s0, %s164
      %p166 = scmp.lt.s32.totalorder %s14, 3
      %s167 = scalar_select %p166, %s14, 3
      %s168 = smul.addr %s167, 4
      %s169 = smul.addr %s168, 8
      %s170 = scalar_lea.vmem %s3, %s169
      %v171 = vld [vmem:[%s165] sm:$0xff]
      %v172 = vld [vmem:[%s165 + $0x8] sm:$0xff]
      %v173 = vld [vmem:[%s165 + $0x10] sm:$0xff]
      %v174 = vld [vmem:[%s165 + $0x18] sm:$0xff]
      %vm175 = vcmask 130048
      %v176 = vsel %vm175, %v171, 0.0
      %177 = vadd.xlane.f32.xlu0 %v176
      %v178 = vpop.xlane.xlu0 %177
      %v179 = vsel %vm175, %v172, 0.0
      %180 = vadd.xlane.f32.xlu0 %v179
      %v181 = vpop.xlane.xlu0 %180
      %v182 = vsel %vm175, %v173, 0.0
      %183 = vadd.xlane.f32.xlu0 %v182
      %v184 = vpop.xlane.xlu0 %183
      %v185 = vsel %vm175, %v174, 0.0
      %186 = vadd.xlane.f32.xlu0 %v185
      %v187 = vpop.xlane.xlu0 %186
      %v188 = vrcp.pop 16.0
      %v189 = vmul.f32 16.0, %v188
      %v190 = vsub.f32 1.0, %v189
      %v191 = vmul.f32 %v188, %v190
      %v192 = vadd.f32 %v188, %v191
      %vm193 = vweird.f32 %v188
      %v194 = vsel %vm193, %v188, %v192
      %v195 = vmul.f32 %v178, %v194
      %v196 = vmul.f32 %v181, %v194
      %v197 = vmul.f32 %v184, %v194
      %v198 = vmul.f32 %v187, %v194
      %v199 = vld [vmem:[%s1] sm:$0xff]
      %v200 = vld [vmem:[%s1 + $0x8] sm:$0xff]
      %v201 = vld [vmem:[%s1 + $0x10] sm:$0xff]
      %v202 = vld [vmem:[%s1 + $0x18] sm:$0xff]
      %v207 = vlaneseq
      %v208 = vand.u32 %v207, 127
      %v209 = vperm.slane %v195, %v208
      %v210 = vadd.s32 %v208, 4294967288
      %v211 = vperm.slane %v196, %v210
      %vm212 = vcmask 130112
      %v213 = vsel %vm212, %v211, %v209
      %v214 = vadd.s32 %v208, 4294967280
      %v215 = vperm.slane %v197, %v214
      %vm216 = vcmask 195712
      %v217 = vsel %vm216, %v215, %v213
      %v218 = vadd.s32 %v208, 4294967272
      %v219 = vperm.slane %v198, %v218
      %vm220 = vcmask 261312
      %v221 = vsel %vm220, %v219, %v217
      %vm222 = vcmask 261120
      %v223 = vsel %vm222, %v221, 0
      %225 = vmatpush.msra.mxu0 0.0
      %226 = vmatpush.msra.mxu0 0.0
      %227 = vmatpush.msra.mxu0 0.0
      %228 = vmatpush.msra.mxu0 0.0
      %229 = vmatpush.msra.mxu0 0.0
      %230 = vmatpush.msra.mxu0 0.0
      %231 = vmatpush.msra.mxu0 0.0
      %232 = vmatpush.msra.mxu0 0.0
      %233 = vmatpush.msra.mxu0 0.0
      %234 = vmatpush.msra.mxu0 0.0
      %235 = vmatpush.msra.mxu0 0.0
      %236 = vmatpush.msra.mxu0 0.0
      %237 = vmatpush.msra.mxu0 %v202
      %238 = vmatpush.msra.mxu0 %v201
      %239 = vmatpush.msra.mxu0 %v200
      %240 = vmatpush.msra.mxu0 %v199
      %241 = vmatmul.f32.gmra.mxu0 %v223
      %v242 = vpop.f32.mrf.mxu0
      %v243 = vadd.f32 0.0, %v242
      %244 = vdwg.mxu0
      %v245 = vmax.f32 %v243, 0.0
      %v246 = vld [vmem:[%s2] sm:$0x3]
      %vm247 = vcmask 15360
      %v249 = vsel %vm247, %v245, 0
      %vm251 = vcmask 1041408
      %v253 = vsel %vm251, %v246, 0
      %255 = vmatpush.msra.mxu0 0.0
      %256 = vmatpush.msra.mxu0 0.0
      %257 = vmatpush.msra.mxu0 0.0
      %258 = vmatpush.msra.mxu0 0.0
      %259 = vmatpush.msra.mxu0 0.0
      %260 = vmatpush.msra.mxu0 0.0
      %261 = vmatpush.msra.mxu0 0.0
      %262 = vmatpush.msra.mxu0 0.0
      %263 = vmatpush.msra.mxu0 0.0
      %264 = vmatpush.msra.mxu0 0.0
      %265 = vmatpush.msra.mxu0 0.0
      %266 = vmatpush.msra.mxu0 0.0
      %267 = vmatpush.msra.mxu0 0.0
      %268 = vmatpush.msra.mxu0 0.0
      %269 = vmatpush.msra.mxu0 0.0
      %270 = vmatpush.msra.mxu0 %v253
      %271 = vmatmul.f32.gmra.mxu0 %v249
      %v272 = vpop.f32.mrf.mxu0
      %v273 = vadd.f32 0.0, %v272
      %274 = vdwg.mxu0
      %v275 = vxor.u32 %v273, 2147483648
      %v276 = vmul.f32 %v275, 1.442695
      %v277 = vpow.pop %v276
      %v278 = vadd.f32 %v277, 1.0
      %v279 = vrcp.pop %v278
      %v280 = vmul.f32 %v278, %v279
      %v281 = vsub.f32 1.0, %v280
      %v282 = vmul.f32 %v279, %v281
      %v283 = vadd.f32 %v279, %v282
      %vm284 = vweird.f32 %v278
      %vm285 = vweird.f32 %v279
      %vm286 = vmor %vm284, %vm285
      %v287 = vsel %vm286, %v279, %v283
      %v288 = vand.u32 2147483647, %v278
      %vm289 = vcmp.eq.f32.partialorder %v288, 8.507059e+37
      %v290 = vand.u32 %v278, 2147483648
      %v291 = vor.u32 1.1754944e-38, %v290
      %v292 = vsel %vm289, %v291, %v287
      %v293 = vmul.f32 1.0, %v292
      %v294 = vperm.slane %v293, 0
      %v295 = vlaneseq
      %v296 = vshrl.u32 %v295, 7
      %298 = vset.pattern.permute.xlu0 %v296
      %299 = vperm.xlu0 %298, %v294
      %v300 = vpop.permute.xlu0 %299
      %v301 = vlaneseq
      %v302 = vshrl.u32 %v301, 7
      %v303 = vadd.s32 %v302, 8
      %304 = vset.pattern.permute.xlu0 %v303
      %305 = vperm.xlu0 %304, %v294
      %v306 = vpop.permute.xlu0 %305
      %v307 = vlaneseq
      %v308 = vshrl.u32 %v307, 7
      %v309 = vadd.s32 %v308, 16
      %310 = vset.pattern.permute.xlu0 %v309
      %311 = vperm.xlu0 %310, %v294
      %v312 = vpop.permute.xlu0 %311
      %v313 = vlaneseq
      %v314 = vshrl.u32 %v313, 7
      %v315 = vadd.s32 %v314, 24
      %316 = vset.pattern.permute.xlu0 %v315
      %317 = vperm.xlu0 %316, %v294
      %v318 = vpop.permute.xlu0 %317
      %v319 = vmul.f32 %v171, %v300
      %v320 = vmul.f32 %v172, %v306
      %v321 = vmul.f32 %v173, %v312
      %v322 = vmul.f32 %v174, %v318
      %323 = vst.msk [vmem:[%s170] sm:$0xff] %vm175, %v319
      %324 = vst.msk [vmem:[%s170 + $0x8] sm:$0xff] %vm175, %v320
      %325 = vst.msk [vmem:[%s170 + $0x10] sm:$0xff] %vm175, %v321
      %326 = vst.msk [vmem:[%s170 + $0x18] sm:$0xff] %vm175, %v322
      %p327 = scmp.lt.s32.totalorder %s14, 3
      %s328 = scalar_select %p327, %s14, 3
      %s329 = smul.addr %s328, 4
      %s330 = smul.addr %s329, 8
      %s331 = scalar_lea.vmem %s3, %s330
      // Predicated region
      $region33: #{tpu_custom_call.1} parent=31 // pred_check
        %p332 = pneg %p100
      $region34: #{tpu_custom_call.1} parent=31 // pred_check_branch
        %334 = sbr.rel (%p332) target = $region36
      $region35: #{tpu_custom_call.1} parent=31 // pred_region
        _
      $region36: #{tpu_custom_call.1} parent=31 // pred_fallthru
        _
    $region32: #{tpu_custom_call.1} parent=5 // pred_fallthru
      _
    %p335 = scmp.le.s32.totalorder 2, %s9
    // Predicated region
    $region37: #{tpu_custom_call.1} parent=5 // pred_check
      %p336 = pneg %p335
    $region38: #{tpu_custom_call.1} parent=5 // pred_check_branch
      %338 = sbr.rel (%p336) target = $region40
    $region39: #{tpu_custom_call.1} parent=5 // pred_region
      %s339 = ssub.s32 %s9, 2
      // Predicated region
      $region41: #{tpu_custom_call.1} parent=39 // pred_check
        %p340 = pneg %p106
      $region42: #{tpu_custom_call.1} parent=39 // pred_check_branch
        %342 = sbr.rel (%p340) target = $region44
      $region43: #{tpu_custom_call.1} parent=39 // pred_region
        %p343 = scmp.lt.s32.totalorder %s15, 3
        %s344 = scalar_select %p343, %s15, 3
        %s345 = smul.addr %s344, 4
        %s346 = smul.addr %s345, 8
        %s347 = scalar_lea.vmem %s3, %s346
      $region44: #{tpu_custom_call.1} parent=39 // pred_fallthru
        _
    $region40: #{tpu_custom_call.1} parent=5 // pred_fallthru
      _
  $region6: #{tpu_custom_call.1} parent=0 // loop_footer
    %s13 = sadd.s32 1, %s9
  $region7: #{tpu_custom_call.1} parent=0 // loop_footer_branch
    %8 = sbr.rel target = $region3
  $region8: #{tpu_custom_call.1} parent=0 // loop_exit
    _

</llo_original>
